<compile_context>
chip_gen: v5e
topology: v5e:2x2
jax: 0.10.0
libtpu: 0.0.40
codegen_flags: <defaults>
</compile_context>

<pallas_src>
import jax
import jax.numpy as jnp
from jax.experimental import pallas as pl
from jax.experimental.pallas import tpu as pltpu


def _convt_rows_kernel(x_ref, w_ref, b_ref, o_ref):
    """One (row-tile, kh) step of the k=2 / stride=2 transposed conv.

    x_ref: (TH*W, C_in)      TH input image rows, pixels flattened row-major
    w_ref: (C_in, 2*C_out)   weights for this kh, columns ordered (kw, c_out)
    b_ref: (1, 2*C_out)      bias tiled once per kw
    o_ref: (TH, W, 2*C_out)  output rows 2*h + kh, last dim ordered (kw, c_out)
    """
    th, w, n2c = o_ref.shape
    y = jnp.dot(x_ref[...], w_ref[...], preferred_element_type=jnp.float32)
    y = y + b_ref[...]
    # Split the leading (row) dim only; lane dim unchanged -> layout-trivial
    # whenever W % 8 == 0.
    o_ref[...] = y.reshape(th, w, n2c).astype(o_ref.dtype)


def convt2x2_stride2(x_nchw, weight, bias):
    """ConvTranspose2d(C_in, C_out, kernel_size=2, stride=2), PyTorch semantics.

    x_nchw: (N, C_in, H, W)
    weight: (C_in, C_out, 2, 2)   (PyTorch ConvTranspose2d weight layout)
    bias:   (C_out,)
    returns (N, C_out, 2H, 2W)  (NCHW)
    """
    N, C_in, H, W = x_nchw.shape
    C_out = weight.shape[1]
    NH = N * H

    # ---- layout prep: one NCHW->NHWC transpose, then free reshapes ----------
    x_rows = jnp.transpose(x_nchw, (0, 2, 3, 1)).reshape(NH * W, C_in)
    # (2, C_in, 2*C_out): w2[kh, ci, kw*C_out + c] = weight[ci, c, kh, kw]
    w2 = jnp.transpose(weight, (2, 0, 3, 1)).reshape(2, C_in, 2 * C_out)
    b2 = jnp.tile(bias, (2,)).reshape(1, 2 * C_out)

    # ---- tile sizing: ~2 MiB per (single) buffer, >= ~512 GEMM rows if possible
    bytes_per_row = 4 * (C_in + 2 * C_out)                 # x row + out row (f32)
    rows_budget = max(8, (2 << 20) // bytes_per_row)
    rows_target = min(4096, rows_budget)
    th = max(1, min(NH, rows_target // max(1, W)))
    if (th * W) % 8 != 0 and th != NH:
        th = NH                                            # full block is always legal
    grid = (pl.cdiv(NH, th), 2)

    cost = pl.CostEstimate(
        flops=2 * (N * H * W) * C_in * (4 * C_out),
        transcendentals=0,
        bytes_accessed=4 * (N * H * W * C_in
                            + 2 * C_in * 2 * C_out
                            + N * H * W * 4 * C_out),
    )

    # Output laid out as (N*H, kh, W, kw*C_out): a pure row-major reshape away
    # from NHWC (N, 2H, 2W, C_out).
    conv_raw = pl.pallas_call(
        _convt_rows_kernel,
        out_shape=jax.ShapeDtypeStruct((NH, 2, W, 2 * C_out), x_nchw.dtype),
        grid=grid,
        in_specs=[
            pl.BlockSpec((th * W, C_in), lambda i, kh: (i, 0)),
            pl.BlockSpec((None, C_in, 2 * C_out), lambda i, kh: (kh, 0, 0)),
            pl.BlockSpec((1, 2 * C_out), lambda i, kh: (0, 0)),
        ],
        out_specs=pl.BlockSpec((th, None, W, 2 * C_out),
                               lambda i, kh: (i, kh, 0, 0)),
        compiler_params=pltpu.CompilerParams(
            dimension_semantics=("parallel", "arbitrary")),
        cost_estimate=cost,
    )(x_rows, w2, b2)

    # Free reshape to NHWC, then a single transpose back to NCHW (fused by XLA
    # with the downstream concat).
    conv_nhwc = conv_raw.reshape(N, 2 * H, 2 * W, C_out)
    return jnp.transpose(conv_nhwc, (0, 3, 1, 2))


def upsample_forward(x, feature_map, weight, bias):
    out = convt2x2_stride2(x, weight, bias)
    # torch.cat((out, feature_map), dim=1)
    return jnp.concatenate([out, feature_map], axis=1)


if __name__ == "__main__":
    key = jax.random.PRNGKey(0)
    k_x, k_f, k_w, k_b = jax.random.split(key, 4)

    N, C, H, W = 2, 4, 16, 16          # channel=4 -> C_out=2, output spatial 32x32
    C_out = C // 2

    x = jax.random.normal(k_x, (N, C, H, W), dtype=jnp.float32)
    feature_map = jax.random.normal(k_f, (N, C_out, 2 * H, 2 * W), dtype=jnp.float32)
    # PyTorch ConvTranspose2d weight shape: (C_in, C_out, 2, 2)
    weight = 0.1 * jax.random.normal(k_w, (C, C_out, 2, 2), dtype=jnp.float32)
    bias = 0.1 * jax.random.normal(k_b, (C_out,), dtype=jnp.float32)

    out = jax.jit(upsample_forward)(x, feature_map, weight, bias)
    out = jax.block_until_ready(out)

    # Silent correctness check against a pure-JAX reference of the same math.
    ref = jnp.einsum("nihw,iokl->nohkwl", x, weight).reshape(N, C_out, 2 * H, 2 * W)
    ref = ref + bias[None, :, None, None]
    ref = jnp.concatenate([ref, feature_map], axis=1)
    assert out.shape == (N, C, 2 * H, 2 * W)
    assert jnp.allclose(out, ref, atol=1e-5, rtol=1e-5)

    print("KERNEL_OK")
</pallas_src>

<mosaic_0001>
module attributes {stable_mosaic.version = 11 : i64} {
  func.func @_convt_rows_kernel(%arg0: i32, %arg1: i32, %arg2: memref<512x4xf32, #tpu.memory_space<vmem>>, %arg3: memref<1x4x4xf32, #tpu.memory_space<vmem>>, %arg4: memref<1x4xf32, #tpu.memory_space<vmem>>, %arg5: memref<32x1x16x4xf32, #tpu.memory_space<vmem>>) attributes {dimension_semantics = [#tpu.dimension_semantics<parallel>, #tpu.dimension_semantics<arbitrary>], iteration_bounds = array<i64: 1, 2>, scalar_prefetch = 0 : i64, scratch_operands = 0 : i64, tpu.core_type = #tpu.core_type<tc>, window_params = [{transform_indices = @transform_0, window_bounds = array<i64: 512, 4>}, {transform_indices = @transform_1, window_bounds = array<i64: 1, 4, 4>}, {pipeline_mode = #tpu.pipeline_mode<synchronous>, transform_indices = @transform_2, window_bounds = array<i64: 1, 4>}, {transform_indices = @transform_3, window_bounds = array<i64: 32, 1, 16, 4>}]} {
    %c0 = arith.constant 0 : index
    %c0_0 = arith.constant 0 : index
    %0 = vector.load %arg2[%c0, %c0_0] : memref<512x4xf32, #tpu.memory_space<vmem>>, vector<512x4xf32>
    %c0_1 = arith.constant 0 : index
    %c0_2 = arith.constant 0 : index
    %c0_3 = arith.constant 0 : index
    %1 = vector.load %arg3[%c0_1, %c0_2, %c0_3] : memref<1x4x4xf32, #tpu.memory_space<vmem>>, vector<1x4x4xf32>
    %2 = vector.shape_cast %1 : vector<1x4x4xf32> to vector<4x4xf32>
    %cst = arith.constant dense<0.000000e+00> : vector<512x4xf32>
    %3 = tpu.matmul %0, %2, %cst {dimension_numbers = #tpu.dot_dimension_numbers<[1], [0], [0], [1], [0, 0, 1, 1], [], []>} : vector<512x4xf32>, vector<4x4xf32>, vector<512x4xf32> -> vector<512x4xf32>
    %c0_4 = arith.constant 0 : index
    %c0_5 = arith.constant 0 : index
    %4 = vector.load %arg4[%c0_4, %c0_5] : memref<1x4xf32, #tpu.memory_space<vmem>>, vector<1x4xf32>
    %5 = vector.broadcast %4 : vector<1x4xf32> to vector<512x4xf32>
    %6 = arith.addf %3, %5 : vector<512x4xf32>
    %7 = vector.shape_cast %6 : vector<512x4xf32> to vector<32x16x4xf32>
    %c0_6 = arith.constant 0 : index
    %c0_7 = arith.constant 0 : index
    %c0_8 = arith.constant 0 : index
    %c0_9 = arith.constant 0 : index
    %8 = vector.load %arg5[%c0_6, %c0_7, %c0_8, %c0_9] : memref<32x1x16x4xf32, #tpu.memory_space<vmem>>, vector<32x1x16x4xf32>
    %9 = vector.shape_cast %8 : vector<32x1x16x4xf32> to vector<32x16x4xf32>
    %10 = vector.shape_cast %7 : vector<32x16x4xf32> to vector<32x1x16x4xf32>
    tpu.vector_store %arg5[%c0_6, %c0_7, %c0_8, %c0_9], %10 {strides = array<i32>} : memref<32x1x16x4xf32, #tpu.memory_space<vmem>>, vector<32x1x16x4xf32>,
    return
  }
  func.func @transform_0(%arg0: i32, %arg1: i32) -> (i32, i32) {
    %c0_i32 = arith.constant 0 : i32
    %c0_i32_0 = arith.constant 0 : i32
    return %arg0, %c0_i32 : i32, i32
  }
  func.func @transform_1(%arg0: i32, %arg1: i32) -> (i32, i32, i32) {
    %c0_i32 = arith.constant 0 : i32
    %c0_i32_0 = arith.constant 0 : i32
    %c0_i32_1 = arith.constant 0 : i32
    return %arg1, %c0_i32, %c0_i32_0 : i32, i32, i32
  }
  func.func @transform_2(%arg0: i32, %arg1: i32) -> (i32, i32) {
    %c0_i32 = arith.constant 0 : i32
    %c0_i32_0 = arith.constant 0 : i32
    %c0_i32_1 = arith.constant 0 : i32
    return %c0_i32, %c0_i32_0 : i32, i32
  }
  func.func @transform_3(%arg0: i32, %arg1: i32) -> (i32, i32, i32, i32) {
    %c0_i32 = arith.constant 0 : i32
    %c0_i32_0 = arith.constant 0 : i32
    %c0_i32_1 = arith.constant 0 : i32
    return %arg0, %arg1, %c0_i32, %c0_i32_0 : i32, i32, i32, i32
  }
}

</mosaic_0001>

<llo_original>
// kernel: tile.8
$region0: #{tile.8}
  #allocation0 [shape = 's32[1]{0}', space=sflag, size = 0x4, scoped, tag = 'scoped memory for tile.8']
  %s0 = inlined_call_operand.vmem [shape: f32[2], index: 0, kind: input, shape index: {}]
  %s1 = inlined_call_operand.vmem [shape: f32[2,2], index: 1, kind: output, shape index: {}]
  // Predicated region
  $region2: #{tile.8} parent=0 // pred_check
    _
  $region3: #{tile.8} parent=0 // pred_check_branch
    %3 = sbr.rel (0) target = $region5
  $region4: #{tile.8} parent=0 // pred_region
    _
  $region5: #{tile.8} parent=0 // pred_fallthru
    _
  %v4 = vld [vmem:[%s0] ss:$0 sm:$0xff]
  %5 = vst [vmem:[%s1] sm:$0x3] %v4

// kernel: tile.9
$region0: #{tile.9}
  %s0 = inlined_call_operand.vmem [shape: f32[2,2], index: 0, kind: input, shape index: {}]
  %s1 = inlined_call_operand.vmem [shape: f32[1,4], index: 1, kind: output, shape index: {}]
  $region1: #{tile.9} parent=0
    #allocation0 [shape = 'u8[4096]{0}', space=vmem, size = 0x1000, scoped, tag = 'scoped mem for output reshape']
    #allocation1 [shape = 'u8[4096]{0}', space=vmem, size = 0x1000, scoped, tag = 'scoped mem for input reshape']
    %s3 = ssub.s32 4, 1
    %v4 = vld [vmem:[%s0] sm:%s3]
    %5 = vst [vmem:[#allocation1] sm:%s3] %v4
    %v6 = vld [vmem:[#allocation1] sm:$0x1]
    %vm7 = vcmask 15360
    %8 = vst.msk [vmem:[#allocation0] sm:$0x1] %vm7, %v6
    %s9 = scalar_lea.vmem [#allocation1], 1
    %v10 = vld [vmem:[%s9] sm:$0x1]
    %11 = vrot.lane.b32.xlu0 %v10, 2
    %v12 = vpop.permute.xlu0 %11
    %vm13 = vcmask 31760
    %14 = vst.msk [vmem:[#allocation0] sm:$0x1] %vm13, %v12
    %s16 = ssub.s32 2, 1
    %v17 = vld [vmem:[#allocation0] sm:%s16]
    %s19 = ssub.s32 2, 1
    %20 = vst [vmem:[%s1] sm:%s19] %v17

// kernel: upsample_forward.1
$region0: #{upsample_forward.1}
  #allocation0 [shape = 'u32[]', space=smem, size = 0x4, offset = 0x4, fixed_abs, tag = 'smem constant byte address 0x4 - core index']
  #allocation1 [shape = 'u32[72,128]{1,0:T(1,128)}', space=vmem, size = 0x9000, scoped, tag = 'internal scratch']
  %s0 = inlined_call_operand.vmem [shape: f32[512,4], index: 0, kind: input, shape index: {}]
  %s1 = inlined_call_operand.vmem [shape: f32[2,4,4], index: 1, kind: input, shape index: {}]
  %s2 = inlined_call_operand.vmem [shape: f32[1,4], index: 2, kind: input, shape index: {}]
  %s3 = inlined_call_operand.vmem [shape: f32[32,2,16,4], index: 3, kind: output, shape index: {}]
  %s4 = sld [smem:[#allocation0]]
  $region79: #{upsample_forward.1} parent=0
    _
  %s6 = ssub.s32 1, %s4
  %s7 = scalar_select 0, %s6, %s4
  $region1: #{upsample_forward.1} parent=0
    #allocation2 [shape = 'u8[524288]{0}', space=vmem, size = 0x80000, scoped, tag = 'output window, operand 0']
    loop: start=0, step=1, limit=4
    $region2: #{upsample_forward.1} parent=1 // loop_pre_header
      _
    $region3: #{upsample_forward.1} parent=1 // loop_header
      %s9 = sphi 0, %s13
      %p10 = scmp.ge.s32.totalorder %s9, 4
      %s16 = sphi 0, %s28
      %s17 = sphi 0, %s24
      %s18 = sphi 0, %s16
      %s19 = sphi 0, %s17
      %s20 = sphi 0, %s18
      %s21 = sphi 0, %s19
      %s31 = sphi 0, %s33
      %s34 = sphi 0, %s31
      %s35 = sphi 0, %s34
      %s51 = sphi 0, %s35
      %s57 = sphi 0, %s59
      %s60 = sphi 0, %s57
      %s61 = sphi 0, %s60
      %s77 = sphi 0, %s61
      %s81 = sphi 0, %s81
      %s83 = sphi 0, %s81
      %s84 = sphi 0, %s83
      %s98 = sphi 0, %s84
      %s106 = sphi 0, %s108
      %s109 = sphi 0, %s106
      %s110 = sphi 0, %s109
      %s126 = sphi 0, %s110
    $region4: #{upsample_forward.1} parent=1 // loop_header_branch
      %12 = sbr.rel (%p10) target = $region8
    $region5: #{upsample_forward.1} parent=1 // loop_body
      %s14 = ssub.s32 %s9, 1
      %s15 = ssub.s32 %s9, 2
      %s22 = sadd.s32 1, %s17
      %p23 = scmp.ge.s32.totalorder %s22, 2
      %s24 = scalar_select %p23, 0, %s22
      %s25 = sadd.s32 1, %s16
      %s26 = scalar_select %p23, %s25, %s16
      %p27 = scmp.ge.s32.totalorder %s26, 1
      %s28 = scalar_select %p27, 0, %s26
      %s29 = ssub.s32 %s16, %s28
      %p30 = scmp.eq.s32.totalorder %s29, 0
      %s32 = sadd.s32 %s31, 1
      %s33 = scalar_select %p30, %s31, %s32
      %p36 = pneg %p30
      %p37 = scmp.eq.s32.totalorder %s9, 1
      %p38 = por %p36, %p37
      %p39 = scmp.ne.s32.totalorder %s31, %s34
      %p40 = scmp.eq.s32.totalorder %s9, 0
      %p41 = por %p39, %p40
      %p42 = scmp.ne.s32.totalorder %s31, %s34
      %p43 = scmp.eq.s32.totalorder %s14, 1
      %p44 = por %p42, %p43
      %p45 = scmp.ne.s32.totalorder %s34, %s35
      %p46 = scmp.eq.s32.totalorder %s14, 0
      %p47 = por %p45, %p46
      %p48 = scmp.ne.s32.totalorder %s34, %s35
      %p49 = scmp.eq.s32.totalorder %s15, 1
      %p50 = por %p48, %p49
      %p52 = scmp.ne.s32.totalorder %s35, %s51
      %p53 = scmp.eq.s32.totalorder %s15, 0
      %p54 = por %p52, %p53
      %s55 = ssub.s32 %s17, %s24
      %p56 = scmp.eq.s32.totalorder %s55, 0
      %s58 = sadd.s32 %s57, 1
      %s59 = scalar_select %p56, %s57, %s58
      %p62 = pneg %p56
      %p63 = scmp.eq.s32.totalorder %s9, 1
      %p64 = por %p62, %p63
      %p65 = scmp.ne.s32.totalorder %s57, %s60
      %p66 = scmp.eq.s32.totalorder %s9, 0
      %p67 = por %p65, %p66
      %p68 = scmp.ne.s32.totalorder %s57, %s60
      %p69 = scmp.eq.s32.totalorder %s14, 1
      %p70 = por %p68, %p69
      %p71 = scmp.ne.s32.totalorder %s60, %s61
      %p72 = scmp.eq.s32.totalorder %s14, 0
      %p73 = por %p71, %p72
      %p74 = scmp.ne.s32.totalorder %s60, %s61
      %p75 = scmp.eq.s32.totalorder %s15, 1
      %p76 = por %p74, %p75
      %p78 = scmp.ne.s32.totalorder %s61, %s77
      %p79 = scmp.eq.s32.totalorder %s15, 0
      %p80 = por %p78, %p79
      %s82 = sadd.s32 %s81, 1
      %p85 = scmp.eq.s32.totalorder %s9, 1
      %p86 = scmp.ne.s32.totalorder %s81, %s83
      %p87 = scmp.eq.s32.totalorder %s9, 0
      %p88 = por %p86, %p87
      %p89 = scmp.ne.s32.totalorder %s81, %s83
      %p90 = scmp.eq.s32.totalorder %s14, 1
      %p91 = por %p89, %p90
      %p92 = scmp.ne.s32.totalorder %s83, %s84
      %p93 = scmp.eq.s32.totalorder %s14, 0
      %p94 = por %p92, %p93
      %p95 = scmp.ne.s32.totalorder %s83, %s84
      %p96 = scmp.eq.s32.totalorder %s15, 1
      %p97 = por %p95, %p96
      %p99 = scmp.ne.s32.totalorder %s84, %s98
      %p100 = scmp.eq.s32.totalorder %s15, 0
      %p101 = por %p99, %p100
      %s102 = ssub.s32 %s16, %s28
      %s103 = ssub.s32 %s17, %s24
      %s104 = sor.u32 %s102, %s103
      %p105 = scmp.eq.s32.totalorder %s104, 0
      %s107 = sadd.s32 %s106, 1
      %s108 = scalar_select %p105, %s106, %s107
      %p111 = pneg %p105
      %p112 = scmp.eq.s32.totalorder %s9, 1
      %p113 = por %p111, %p112
      %p114 = scmp.ne.s32.totalorder %s106, %s109
      %p115 = scmp.eq.s32.totalorder %s9, 0
      %p116 = por %p114, %p115
      %p117 = scmp.ne.s32.totalorder %s106, %s109
      %p118 = scmp.eq.s32.totalorder %s14, 1
      %p119 = por %p117, %p118
      %p120 = scmp.ne.s32.totalorder %s109, %s110
      %p121 = scmp.eq.s32.totalorder %s14, 0
      %p122 = por %p120, %p121
      %p123 = scmp.ne.s32.totalorder %s109, %s110
      %p124 = scmp.eq.s32.totalorder %s15, 1
      %p125 = por %p123, %p124
      %p127 = scmp.ne.s32.totalorder %s110, %s126
      %p128 = scmp.eq.s32.totalorder %s15, 0
      %p129 = por %p127, %p128
      %p130 = scmp.le.s32.totalorder 1, %s9
      %p131 = scmp.lt.s32.totalorder %s9, 3
      %p132 = pnand %p130, %p131
      %p133 = pneg %p132
      // Predicated region
      $region9: #{upsample_forward.1} parent=5 // pred_check
        _
      $region10: #{upsample_forward.1} parent=5 // pred_check_branch
        %135 = sbr.rel (%p132) target = $region12
      $region11: #{upsample_forward.1} parent=5 // pred_region
        %s136 = ssub.s32 %s9, 1
        // Predicated region
        $region13: #{upsample_forward.1} parent=11 // pred_check
          %p137 = pneg %p47
        $region14: #{upsample_forward.1} parent=11 // pred_check_branch
          %139 = sbr.rel (%p137) target = $region16
        $region15: #{upsample_forward.1} parent=11 // pred_region
          %s140 = smul.u32 64, %s18
          %p141 = scmp.lt.s32.totalorder %s140, 63
          %s142 = scalar_select %p141, %s140, 63
          %s143 = smul.addr %s142, 8
          %s144 = scalar_lea.vmem %s0, %s143
          %s145 = smul.u32 64, %s18
        $region16: #{upsample_forward.1} parent=11 // pred_fallthru
          _
        // Predicated region
        $region17: #{upsample_forward.1} parent=11 // pred_check
          %p146 = pneg %p94
        $region18: #{upsample_forward.1} parent=11 // pred_check_branch
          %148 = sbr.rel (%p146) target = $region20
        $region19: #{upsample_forward.1} parent=11 // pred_region
          _
        $region20: #{upsample_forward.1} parent=11 // pred_fallthru
          _
      $region12: #{upsample_forward.1} parent=5 // pred_fallthru
        _
      %p149 = scmp.lt.s32.totalorder %s9, 2
      // Predicated region
      $region21: #{upsample_forward.1} parent=5 // pred_check
        %p150 = pneg %p149
      $region22: #{upsample_forward.1} parent=5 // pred_check_branch
        %152 = sbr.rel (%p150) target = $region24
      $region23: #{upsample_forward.1} parent=5 // pred_region
        // Predicated region
        $region25: #{upsample_forward.1} parent=23 // pred_check
          %p153 = pneg %p67
        $region26: #{upsample_forward.1} parent=23 // pred_check_branch
          %155 = sbr.rel (%p153) target = $region28
        $region27: #{upsample_forward.1} parent=23 // pred_region
          %p156 = scmp.lt.s32.totalorder %s17, 1
          %s157 = scalar_select %p156, %s17, 1
          %s158 = smul.addr %s157, 4
          %s159 = scalar_lea.vmem %s1, %s158
        $region28: #{upsample_forward.1} parent=23 // pred_fallthru
          _
      $region24: #{upsample_forward.1} parent=5 // pred_fallthru
        _
      %p160 = scmp.le.s32.totalorder 1, %s9
      %p161 = scmp.lt.s32.totalorder %s9, 3
      %p162 = pnand %p160, %p161
      %p163 = pneg %p162
      // Predicated region
      $region29: #{upsample_forward.1} parent=5 // pred_check
        _
      $region30: #{upsample_forward.1} parent=5 // pred_check_branch
        %165 = sbr.rel (%p162) target = $region32
      $region31: #{upsample_forward.1} parent=5 // pred_region
        %s166 = ssub.s32 %s9, 1
        %s167 = smul.u32 64, %s18
        %p168 = scmp.lt.s32.totalorder %s167, 63
        %s169 = scalar_select %p168, %s167, 63
        %s170 = smul.addr %s169, 8
        %s171 = scalar_lea.vmem %s0, %s170
        %p172 = pneg %p47
        %p173 = pneg %p44
        %p174 = scmp.lt.s32.totalorder %s19, 1
        %s175 = scalar_select %p174, %s19, 1
        %s176 = smul.addr %s175, 4
        %s177 = scalar_lea.vmem %s1, %s176
        %p178 = pneg %p73
        %p179 = pneg %p70
        %p180 = pneg %p94
        %p181 = pneg %p91
        %p182 = pneg %p122
        %p183 = pneg %p119
        %s184 = sand.u32 %s109, 1
        %s185 = sand.u32 %s109, 1
        %s186 = smul.addr %s185, 512
        %s187 = scalar_lea.vmem [#allocation2], %s186
        %s188 = smul.u32 64, %s18
        %p189 = scmp.lt.s32.totalorder %s188, 63
        %s190 = scalar_select %p189, %s188, 63
        %s191 = smul.addr %s190, 8
        %s192 = scalar_lea.vmem %s0, %s191
        %s193 = smul.u32 64, %s18
        %p194 = scmp.lt.s32.totalorder %s19, 1
        %s195 = scalar_select %p194, %s19, 1
        %s196 = smul.addr %s195, 4
        %s197 = scalar_lea.vmem %s1, %s196
        %s198 = smul.u32 32, %s18
        %v199 = vld [vmem:[%s192] sm:$0xff]
        %v200 = vld [vmem:[%s192 + $0x8] sm:$0xff]
        %v201 = vld [vmem:[%s192 + $0x10] sm:$0xff]
        %v202 = vld [vmem:[%s192 + $0x18] sm:$0xff]
        %v203 = vld [vmem:[%s192 + $0x20] sm:$0xff]
        %v204 = vld [vmem:[%s192 + $0x28] sm:$0xff]
        %v205 = vld [vmem:[%s192 + $0x30] sm:$0xff]
        %v206 = vld [vmem:[%s192 + $0x38] sm:$0xff]
        %v207 = vld [vmem:[%s192 + $0x40] sm:$0xff]
        %v208 = vld [vmem:[%s192 + $0x48] sm:$0xff]
        %v209 = vld [vmem:[%s192 + $0x50] sm:$0xff]
        %v210 = vld [vmem:[%s192 + $0x58] sm:$0xff]
        %v211 = vld [vmem:[%s192 + $0x60] sm:$0xff]
        %v212 = vld [vmem:[%s192 + $0x68] sm:$0xff]
        %v213 = vld [vmem:[%s192 + $0x70] sm:$0xff]
        %v214 = vld [vmem:[%s192 + $0x78] sm:$0xff]
        %v215 = vld [vmem:[%s192 + $0x80] sm:$0xff]
        %v216 = vld [vmem:[%s192 + $0x88] sm:$0xff]
        %v217 = vld [vmem:[%s192 + $0x90] sm:$0xff]
        %v218 = vld [vmem:[%s192 + $0x98] sm:$0xff]
        %v219 = vld [vmem:[%s192 + $0xa0] sm:$0xff]
        %v220 = vld [vmem:[%s192 + $0xa8] sm:$0xff]
        %v221 = vld [vmem:[%s192 + $0xb0] sm:$0xff]
        %v222 = vld [vmem:[%s192 + $0xb8] sm:$0xff]
        %v223 = vld [vmem:[%s192 + $0xc0] sm:$0xff]
        %v224 = vld [vmem:[%s192 + $0xc8] sm:$0xff]
        %v225 = vld [vmem:[%s192 + $0xd0] sm:$0xff]
        %v226 = vld [vmem:[%s192 + $0xd8] sm:$0xff]
        %v227 = vld [vmem:[%s192 + $0xe0] sm:$0xff]
        %v228 = vld [vmem:[%s192 + $0xe8] sm:$0xff]
        %v229 = vld [vmem:[%s192 + $0xf0] sm:$0xff]
        %v230 = vld [vmem:[%s192 + $0xf8] sm:$0xff]
        %v231 = vld [vmem:[%s192 + $0x100] sm:$0xff]
        %v232 = vld [vmem:[%s192 + $0x108] sm:$0xff]
        %v233 = vld [vmem:[%s192 + $0x110] sm:$0xff]
        %v234 = vld [vmem:[%s192 + $0x118] sm:$0xff]
        %v235 = vld [vmem:[%s192 + $0x120] sm:$0xff]
        %v236 = vld [vmem:[%s192 + $0x128] sm:$0xff]
        %v237 = vld [vmem:[%s192 + $0x130] sm:$0xff]
        %v238 = vld [vmem:[%s192 + $0x138] sm:$0xff]
        %v239 = vld [vmem:[%s192 + $0x140] sm:$0xff]
        %v240 = vld [vmem:[%s192 + $0x148] sm:$0xff]
        %v241 = vld [vmem:[%s192 + $0x150] sm:$0xff]
        %v242 = vld [vmem:[%s192 + $0x158] sm:$0xff]
        %v243 = vld [vmem:[%s192 + $0x160] sm:$0xff]
        %v244 = vld [vmem:[%s192 + $0x168] sm:$0xff]
        %v245 = vld [vmem:[%s192 + $0x170] sm:$0xff]
        %v246 = vld [vmem:[%s192 + $0x178] sm:$0xff]
        %v247 = vld [vmem:[%s192 + $0x180] sm:$0xff]
        %v248 = vld [vmem:[%s192 + $0x188] sm:$0xff]
        %v249 = vld [vmem:[%s192 + $0x190] sm:$0xff]
        %v250 = vld [vmem:[%s192 + $0x198] sm:$0xff]
        %v251 = vld [vmem:[%s192 + $0x1a0] sm:$0xff]
        %v252 = vld [vmem:[%s192 + $0x1a8] sm:$0xff]
        %v253 = vld [vmem:[%s192 + $0x1b0] sm:$0xff]
        %v254 = vld [vmem:[%s192 + $0x1b8] sm:$0xff]
        %v255 = vld [vmem:[%s192 + $0x1c0] sm:$0xff]
        %v256 = vld [vmem:[%s192 + $0x1c8] sm:$0xff]
        %v257 = vld [vmem:[%s192 + $0x1d0] sm:$0xff]
        %v258 = vld [vmem:[%s192 + $0x1d8] sm:$0xff]
        %v259 = vld [vmem:[%s192 + $0x1e0] sm:$0xff]
        %v260 = vld [vmem:[%s192 + $0x1e8] sm:$0xff]
        %v261 = vld [vmem:[%s192 + $0x1f0] sm:$0xff]
        %v262 = vld [vmem:[%s192 + $0x1f8] sm:$0xff]
        %v263 = vld [vmem:[%s197] sm:$0xf]
        %v264 = vld [vmem:[%s2] sm:$0x1]
        %v266 = vperm.slane %v264, 0
        %vm268 = vcmask 31744
        %v270 = vsel %vm268, %v199, 0
        %v273 = vsel %vm268, %v200, 0
        %v276 = vsel %vm268, %v201, 0
        %v279 = vsel %vm268, %v202, 0
        %v282 = vsel %vm268, %v203, 0
        %v285 = vsel %vm268, %v204, 0
        %v288 = vsel %vm268, %v205, 0
        %v291 = vsel %vm268, %v206, 0
        %v294 = vsel %vm268, %v207, 0
        %v297 = vsel %vm268, %v208, 0
        %v300 = vsel %vm268, %v209, 0
        %v303 = vsel %vm268, %v210, 0
        %v306 = vsel %vm268, %v211, 0
        %v309 = vsel %vm268, %v212, 0
        %v312 = vsel %vm268, %v213, 0
        %v315 = vsel %vm268, %v214, 0
        %v318 = vsel %vm268, %v215, 0
        %v321 = vsel %vm268, %v216, 0
        %v324 = vsel %vm268, %v217, 0
        %v327 = vsel %vm268, %v218, 0
        %v330 = vsel %vm268, %v219, 0
        %v333 = vsel %vm268, %v220, 0
        %v336 = vsel %vm268, %v221, 0
        %v339 = vsel %vm268, %v222, 0
        %v342 = vsel %vm268, %v223, 0
        %v345 = vsel %vm268, %v224, 0
        %v348 = vsel %vm268, %v225, 0
        %v351 = vsel %vm268, %v226, 0
        %v354 = vsel %vm268, %v227, 0
        %v357 = vsel %vm268, %v228, 0
        %v360 = vsel %vm268, %v229, 0
        %v363 = vsel %vm268, %v230, 0
        %v366 = vsel %vm268, %v231, 0
        %v369 = vsel %vm268, %v232, 0
        %v372 = vsel %vm268, %v233, 0
        %v375 = vsel %vm268, %v234, 0
        %v378 = vsel %vm268, %v235, 0
        %v381 = vsel %vm268, %v236, 0
        %v384 = vsel %vm268, %v237, 0
        %v387 = vsel %vm268, %v238, 0
        %v390 = vsel %vm268, %v239, 0
        %v393 = vsel %vm268, %v240, 0
        %v396 = vsel %vm268, %v241, 0
        %v399 = vsel %vm268, %v242, 0
        %v402 = vsel %vm268, %v243, 0
        %v405 = vsel %vm268, %v244, 0
        %v408 = vsel %vm268, %v245, 0
        %v411 = vsel %vm268, %v246, 0
        %v414 = vsel %vm268, %v247, 0
        %v417 = vsel %vm268, %v248, 0
        %v420 = vsel %vm268, %v249, 0
        %v423 = vsel %vm268, %v250, 0
        %v426 = vsel %vm268, %v251, 0
        %v429 = vsel %vm268, %v252, 0
        %v432 = vsel %vm268, %v253, 0
        %v435 = vsel %vm268, %v254, 0
        %v438 = vsel %vm268, %v255, 0
        %v441 = vsel %vm268, %v256, 0
        %v444 = vsel %vm268, %v257, 0
        %v447 = vsel %vm268, %v258, 0
        %v450 = vsel %vm268, %v259, 0
        %v453 = vsel %vm268, %v260, 0
        %v456 = vsel %vm268, %v261, 0
        %v459 = vsel %vm268, %v262, 0
        %vm461 = vcmask 1043456
        %v463 = vsel %vm461, %v263, 0
        %465 = vmatpush.msra.mxu0 0.0
        %466 = vmatpush.msra.mxu0 0.0
        %467 = vmatpush.msra.mxu0 0.0
        %468 = vmatpush.msra.mxu0 0.0
        %469 = vmatpush.msra.mxu0 0.0
        %470 = vmatpush.msra.mxu0 0.0
        %471 = vmatpush.msra.mxu0 0.0
        %472 = vmatpush.msra.mxu0 0.0
        %473 = vmatpush.msra.mxu0 0.0
        %474 = vmatpush.msra.mxu0 0.0
        %475 = vmatpush.msra.mxu0 0.0
        %476 = vmatpush.msra.mxu0 0.0
        %477 = vmatpush.msra.mxu0 0.0
        %478 = vmatpush.msra.mxu0 0.0
        %479 = vmatpush.msra.mxu0 0.0
        %480 = vmatpush.msra.mxu0 %v463
        %481 = vmatmul.f32.gmra.mxu0 %v270
        %v482 = vpop.f32.mrf.mxu0
        %v483 = vadd.f32 %v266, %v482
        %484 = vmatmul.f32.gmra.mxu0 %v273
        %v485 = vpop.f32.mrf.mxu0
        %v486 = vadd.f32 %v266, %v485
        %487 = vmatmul.f32.gmra.mxu0 %v276
        %v488 = vpop.f32.mrf.mxu0
        %v489 = vadd.f32 %v266, %v488
        %490 = vmatmul.f32.gmra.mxu0 %v279
        %v491 = vpop.f32.mrf.mxu0
        %v492 = vadd.f32 %v266, %v491
        %493 = vmatmul.f32.gmra.mxu0 %v282
        %v494 = vpop.f32.mrf.mxu0
        %v495 = vadd.f32 %v266, %v494
        %496 = vmatmul.f32.gmra.mxu0 %v285
        %v497 = vpop.f32.mrf.mxu0
        %v498 = vadd.f32 %v266, %v497
        %499 = vmatmul.f32.gmra.mxu0 %v288
        %v500 = vpop.f32.mrf.mxu0
        %v501 = vadd.f32 %v266, %v500
        %502 = vmatmul.f32.gmra.mxu0 %v291
        %v503 = vpop.f32.mrf.mxu0
        %v504 = vadd.f32 %v266, %v503
        %505 = vmatmul.f32.gmra.mxu0 %v294
        %v506 = vpop.f32.mrf.mxu0
        %v507 = vadd.f32 %v266, %v506
        %508 = vmatmul.f32.gmra.mxu0 %v297
        %v509 = vpop.f32.mrf.mxu0
        %v510 = vadd.f32 %v266, %v509
        %511 = vmatmul.f32.gmra.mxu0 %v300
        %v512 = vpop.f32.mrf.mxu0
        %v513 = vadd.f32 %v266, %v512
        %514 = vmatmul.f32.gmra.mxu0 %v303
        %v515 = vpop.f32.mrf.mxu0
        %v516 = vadd.f32 %v266, %v515
        %517 = vmatmul.f32.gmra.mxu0 %v306
        %v518 = vpop.f32.mrf.mxu0
        %v519 = vadd.f32 %v266, %v518
        %520 = vmatmul.f32.gmra.mxu0 %v309
        %v521 = vpop.f32.mrf.mxu0
        %v522 = vadd.f32 %v266, %v521
        %523 = vmatmul.f32.gmra.mxu0 %v312
        %v524 = vpop.f32.mrf.mxu0
        %v525 = vadd.f32 %v266, %v524
        %526 = vmatmul.f32.gmra.mxu0 %v315
        %v527 = vpop.f32.mrf.mxu0
        %v528 = vadd.f32 %v266, %v527
        %529 = vmatmul.f32.gmra.mxu0 %v318
        %v530 = vpop.f32.mrf.mxu0
        %v531 = vadd.f32 %v266, %v530
        %532 = vmatmul.f32.gmra.mxu0 %v321
        %v533 = vpop.f32.mrf.mxu0
        %v534 = vadd.f32 %v266, %v533
        %535 = vmatmul.f32.gmra.mxu0 %v324
        %v536 = vpop.f32.mrf.mxu0
        %v537 = vadd.f32 %v266, %v536
        %538 = vmatmul.f32.gmra.mxu0 %v327
        %v539 = vpop.f32.mrf.mxu0
        %v540 = vadd.f32 %v266, %v539
        %541 = vmatmul.f32.gmra.mxu0 %v330
        %v542 = vpop.f32.mrf.mxu0
        %v543 = vadd.f32 %v266, %v542
        %544 = vmatmul.f32.gmra.mxu0 %v333
        %v545 = vpop.f32.mrf.mxu0
        %v546 = vadd.f32 %v266, %v545
        %547 = vmatmul.f32.gmra.mxu0 %v336
        %v548 = vpop.f32.mrf.mxu0
        %v549 = vadd.f32 %v266, %v548
        %550 = vmatmul.f32.gmra.mxu0 %v339
        %v551 = vpop.f32.mrf.mxu0
        %v552 = vadd.f32 %v266, %v551
        %553 = vmatmul.f32.gmra.mxu0 %v342
        %v554 = vpop.f32.mrf.mxu0
        %v555 = vadd.f32 %v266, %v554
        %556 = vmatmul.f32.gmra.mxu0 %v345
        %v557 = vpop.f32.mrf.mxu0
        %v558 = vadd.f32 %v266, %v557
        %559 = vmatmul.f32.gmra.mxu0 %v348
        %v560 = vpop.f32.mrf.mxu0
        %v561 = vadd.f32 %v266, %v560
        %562 = vmatmul.f32.gmra.mxu0 %v351
        %v563 = vpop.f32.mrf.mxu0
        %v564 = vadd.f32 %v266, %v563
        %565 = vmatmul.f32.gmra.mxu0 %v354
        %v566 = vpop.f32.mrf.mxu0
        %v567 = vadd.f32 %v266, %v566
        %568 = vmatmul.f32.gmra.mxu0 %v357
        %v569 = vpop.f32.mrf.mxu0
        %v570 = vadd.f32 %v266, %v569
        %571 = vmatmul.f32.gmra.mxu0 %v360
        %v572 = vpop.f32.mrf.mxu0
        %v573 = vadd.f32 %v266, %v572
        %574 = vmatmul.f32.gmra.mxu0 %v363
        %v575 = vpop.f32.mrf.mxu0
        %v576 = vadd.f32 %v266, %v575
        %577 = vmatmul.f32.gmra.mxu0 %v366
        %v578 = vpop.f32.mrf.mxu0
        %v579 = vadd.f32 %v266, %v578
        %580 = vmatmul.f32.gmra.mxu0 %v369
        %v581 = vpop.f32.mrf.mxu0
        %v582 = vadd.f32 %v266, %v581
        %583 = vmatmul.f32.gmra.mxu0 %v372
        %v584 = vpop.f32.mrf.mxu0
        %v585 = vadd.f32 %v266, %v584
        %586 = vmatmul.f32.gmra.mxu0 %v375
        %v587 = vpop.f32.mrf.mxu0
        %v588 = vadd.f32 %v266, %v587
        %589 = vmatmul.f32.gmra.mxu0 %v378
        %v590 = vpop.f32.mrf.mxu0
        %v591 = vadd.f32 %v266, %v590
        %592 = vmatmul.f32.gmra.mxu0 %v381
        %v593 = vpop.f32.mrf.mxu0
        %v594 = vadd.f32 %v266, %v593
        %595 = vmatmul.f32.gmra.mxu0 %v384
        %v596 = vpop.f32.mrf.mxu0
        %v597 = vadd.f32 %v266, %v596
        %598 = vmatmul.f32.gmra.mxu0 %v387
        %v599 = vpop.f32.mrf.mxu0
        %v600 = vadd.f32 %v266, %v599
        %601 = vmatmul.f32.gmra.mxu0 %v390
        %v602 = vpop.f32.mrf.mxu0
        %v603 = vadd.f32 %v266, %v602
        %604 = vmatmul.f32.gmra.mxu0 %v393
        %v605 = vpop.f32.mrf.mxu0
        %v606 = vadd.f32 %v266, %v605
        %607 = vmatmul.f32.gmra.mxu0 %v396
        %v608 = vpop.f32.mrf.mxu0
        %v609 = vadd.f32 %v266, %v608
        %610 = vmatmul.f32.gmra.mxu0 %v399
        %v611 = vpop.f32.mrf.mxu0
        %v612 = vadd.f32 %v266, %v611
        %613 = vmatmul.f32.gmra.mxu0 %v402
        %v614 = vpop.f32.mrf.mxu0
        %v615 = vadd.f32 %v266, %v614
        %616 = vmatmul.f32.gmra.mxu0 %v405
        %v617 = vpop.f32.mrf.mxu0
        %v618 = vadd.f32 %v266, %v617
        %619 = vmatmul.f32.gmra.mxu0 %v408
        %v620 = vpop.f32.mrf.mxu0
        %v621 = vadd.f32 %v266, %v620
        %622 = vmatmul.f32.gmra.mxu0 %v411
        %v623 = vpop.f32.mrf.mxu0
        %v624 = vadd.f32 %v266, %v623
        %625 = vmatmul.f32.gmra.mxu0 %v414
        %v626 = vpop.f32.mrf.mxu0
        %v627 = vadd.f32 %v266, %v626
        %628 = vmatmul.f32.gmra.mxu0 %v417
        %v629 = vpop.f32.mrf.mxu0
        %v630 = vadd.f32 %v266, %v629
        %631 = vmatmul.f32.gmra.mxu0 %v420
        %v632 = vpop.f32.mrf.mxu0
        %v633 = vadd.f32 %v266, %v632
        %634 = vmatmul.f32.gmra.mxu0 %v423
        %v635 = vpop.f32.mrf.mxu0
        %v636 = vadd.f32 %v266, %v635
        %637 = vmatmul.f32.gmra.mxu0 %v426
        %v638 = vpop.f32.mrf.mxu0
        %v639 = vadd.f32 %v266, %v638
        %640 = vmatmul.f32.gmra.mxu0 %v429
        %v641 = vpop.f32.mrf.mxu0
        %v642 = vadd.f32 %v266, %v641
        %643 = vmatmul.f32.gmra.mxu0 %v432
        %v644 = vpop.f32.mrf.mxu0
        %v645 = vadd.f32 %v266, %v644
        %646 = vmatmul.f32.gmra.mxu0 %v435
        %v647 = vpop.f32.mrf.mxu0
        %v648 = vadd.f32 %v266, %v647
        %649 = vmatmul.f32.gmra.mxu0 %v438
        %v650 = vpop.f32.mrf.mxu0
        %v651 = vadd.f32 %v266, %v650
        %652 = vmatmul.f32.gmra.mxu0 %v441
        %v653 = vpop.f32.mrf.mxu0
        %v654 = vadd.f32 %v266, %v653
        %655 = vmatmul.f32.gmra.mxu0 %v444
        %v656 = vpop.f32.mrf.mxu0
        %v657 = vadd.f32 %v266, %v656
        %658 = vmatmul.f32.gmra.mxu0 %v447
        %v659 = vpop.f32.mrf.mxu0
        %v660 = vadd.f32 %v266, %v659
        %661 = vmatmul.f32.gmra.mxu0 %v450
        %v662 = vpop.f32.mrf.mxu0
        %v663 = vadd.f32 %v266, %v662
        %664 = vmatmul.f32.gmra.mxu0 %v453
        %v665 = vpop.f32.mrf.mxu0
        %v666 = vadd.f32 %v266, %v665
        %667 = vmatmul.f32.gmra.mxu0 %v456
        %v668 = vpop.f32.mrf.mxu0
        %v669 = vadd.f32 %v266, %v668
        %670 = vmatmul.f32.gmra.mxu0 %v459
        %v671 = vpop.f32.mrf.mxu0
        %v672 = vadd.f32 %v266, %v671
        %673 = vdwg.mxu0
        %674 = vst.msk [vmem:[%s187] sm:$0xff] %vm268, %v483
        %675 = vst.msk [vmem:[%s187 + $0x8] sm:$0xff] %vm268, %v486
        %676 = vst.msk [vmem:[%s187 + $0x10] sm:$0xff] %vm268, %v489
        %677 = vst.msk [vmem:[%s187 + $0x18] sm:$0xff] %vm268, %v492
        %678 = vst.msk [vmem:[%s187 + $0x20] sm:$0xff] %vm268, %v495
        %679 = vst.msk [vmem:[%s187 + $0x28] sm:$0xff] %vm268, %v498
        %680 = vst.msk [vmem:[%s187 + $0x30] sm:$0xff] %vm268, %v501
        %681 = vst.msk [vmem:[%s187 + $0x38] sm:$0xff] %vm268, %v504
        %682 = vst.msk [vmem:[%s187 + $0x40] sm:$0xff] %vm268, %v507
        %683 = vst.msk [vmem:[%s187 + $0x48] sm:$0xff] %vm268, %v510
        %684 = vst.msk [vmem:[%s187 + $0x50] sm:$0xff] %vm268, %v513
        %685 = vst.msk [vmem:[%s187 + $0x58] sm:$0xff] %vm268, %v516
        %686 = vst.msk [vmem:[%s187 + $0x60] sm:$0xff] %vm268, %v519
        %687 = vst.msk [vmem:[%s187 + $0x68] sm:$0xff] %vm268, %v522
        %688 = vst.msk [vmem:[%s187 + $0x70] sm:$0xff] %vm268, %v525
        %689 = vst.msk [vmem:[%s187 + $0x78] sm:$0xff] %vm268, %v528
        %690 = vst.msk [vmem:[%s187 + $0x80] sm:$0xff] %vm268, %v531
        %691 = vst.msk [vmem:[%s187 + $0x88] sm:$0xff] %vm268, %v534
        %692 = vst.msk [vmem:[%s187 + $0x90] sm:$0xff] %vm268, %v537
        %693 = vst.msk [vmem:[%s187 + $0x98] sm:$0xff] %vm268, %v540
        %694 = vst.msk [vmem:[%s187 + $0xa0] sm:$0xff] %vm268, %v543
        %695 = vst.msk [vmem:[%s187 + $0xa8] sm:$0xff] %vm268, %v546
        %696 = vst.msk [vmem:[%s187 + $0xb0] sm:$0xff] %vm268, %v549
        %697 = vst.msk [vmem:[%s187 + $0xb8] sm:$0xff] %vm268, %v552
        %698 = vst.msk [vmem:[%s187 + $0xc0] sm:$0xff] %vm268, %v555
        %699 = vst.msk [vmem:[%s187 + $0xc8] sm:$0xff] %vm268, %v558
        %700 = vst.msk [vmem:[%s187 + $0xd0] sm:$0xff] %vm268, %v561
        %701 = vst.msk [vmem:[%s187 + $0xd8] sm:$0xff] %vm268, %v564
        %702 = vst.msk [vmem:[%s187 + $0xe0] sm:$0xff] %vm268, %v567
        %703 = vst.msk [vmem:[%s187 + $0xe8] sm:$0xff] %vm268, %v570
        %704 = vst.msk [vmem:[%s187 + $0xf0] sm:$0xff] %vm268, %v573
        %705 = vst.msk [vmem:[%s187 + $0xf8] sm:$0xff] %vm268, %v576
        %706 = vst.msk [vmem:[%s187 + $0x100] sm:$0xff] %vm268, %v579
        %707 = vst.msk [vmem:[%s187 + $0x108] sm:$0xff] %vm268, %v582
        %708 = vst.msk [vmem:[%s187 + $0x110] sm:$0xff] %vm268, %v585
        %709 = vst.msk [vmem:[%s187 + $0x118] sm:$0xff] %vm268, %v588
        %710 = vst.msk [vmem:[%s187 + $0x120] sm:$0xff] %vm268, %v591
        %711 = vst.msk [vmem:[%s187 + $0x128] sm:$0xff] %vm268, %v594
        %712 = vst.msk [vmem:[%s187 + $0x130] sm:$0xff] %vm268, %v597
        %713 = vst.msk [vmem:[%s187 + $0x138] sm:$0xff] %vm268, %v600
        %714 = vst.msk [vmem:[%s187 + $0x140] sm:$0xff] %vm268, %v603
        %715 = vst.msk [vmem:[%s187 + $0x148] sm:$0xff] %vm268, %v606
        %716 = vst.msk [vmem:[%s187 + $0x150] sm:$0xff] %vm268, %v609
        %717 = vst.msk [vmem:[%s187 + $0x158] sm:$0xff] %vm268, %v612
        %718 = vst.msk [vmem:[%s187 + $0x160] sm:$0xff] %vm268, %v615
        %719 = vst.msk [vmem:[%s187 + $0x168] sm:$0xff] %vm268, %v618
        %720 = vst.msk [vmem:[%s187 + $0x170] sm:$0xff] %vm268, %v621
        %721 = vst.msk [vmem:[%s187 + $0x178] sm:$0xff] %vm268, %v624
        %722 = vst.msk [vmem:[%s187 + $0x180] sm:$0xff] %vm268, %v627
        %723 = vst.msk [vmem:[%s187 + $0x188] sm:$0xff] %vm268, %v630
        %724 = vst.msk [vmem:[%s187 + $0x190] sm:$0xff] %vm268, %v633
        %725 = vst.msk [vmem:[%s187 + $0x198] sm:$0xff] %vm268, %v636
        %726 = vst.msk [vmem:[%s187 + $0x1a0] sm:$0xff] %vm268, %v639
        %727 = vst.msk [vmem:[%s187 + $0x1a8] sm:$0xff] %vm268, %v642
        %728 = vst.msk [vmem:[%s187 + $0x1b0] sm:$0xff] %vm268, %v645
        %729 = vst.msk [vmem:[%s187 + $0x1b8] sm:$0xff] %vm268, %v648
        %730 = vst.msk [vmem:[%s187 + $0x1c0] sm:$0xff] %vm268, %v651
        %731 = vst.msk [vmem:[%s187 + $0x1c8] sm:$0xff] %vm268, %v654
        %732 = vst.msk [vmem:[%s187 + $0x1d0] sm:$0xff] %vm268, %v657
        %733 = vst.msk [vmem:[%s187 + $0x1d8] sm:$0xff] %vm268, %v660
        %734 = vst.msk [vmem:[%s187 + $0x1e0] sm:$0xff] %vm268, %v663
        %735 = vst.msk [vmem:[%s187 + $0x1e8] sm:$0xff] %vm268, %v666
        %736 = vst.msk [vmem:[%s187 + $0x1f0] sm:$0xff] %vm268, %v669
        %737 = vst.msk [vmem:[%s187 + $0x1f8] sm:$0xff] %vm268, %v672
        %s738 = sand.u32 %s109, 1
        %s739 = sand.u32 %s109, 1
        %s740 = smul.addr %s739, 512
        %s741 = scalar_lea.vmem [#allocation2], %s740
        // Predicated region
        $region33: #{upsample_forward.1} parent=31 // pred_check
          %p742 = pneg %p119
        $region34: #{upsample_forward.1} parent=31 // pred_check_branch
          %744 = sbr.rel (%p742) target = $region36
        $region35: #{upsample_forward.1} parent=31 // pred_region
          %s745 = smul.u32 32, %s18
          %s746 = smul.addr %s19, 2
          %s747 = smul.addr %s745, 4
          %s748 = sadd.s32 %s746, %s747
          %s749 = smul.addr %s748, 8
          %s750 = scalar_lea.vmem %s3, %s749
          // Predicated region
          $region37: #{upsample_forward.1} parent=35 // pred_check
            _
          $region38: #{upsample_forward.1} parent=35 // pred_check_branch
            %752 = sbr.rel (0) target = $region40
          $region39: #{upsample_forward.1} parent=35 // pred_region
            // Predicated region
            $region41: #{upsample_forward.1} parent=39 // pred_check
              _
            $region42: #{upsample_forward.1} parent=39 // pred_check_branch
              %754 = sbr.rel (0) target = $region44
            $region43: #{upsample_forward.1} parent=39 // pred_region
              // Predicated region
              $region56: #{upsample_forward.1} parent=43 // pred_check
                _
              $region57: #{upsample_forward.1} parent=43 // pred_check_branch
                %896 = sbr.rel (0) target = $region59
              $region58: #{upsample_forward.1} parent=43 // pred_region
                loop: start=0, step=1, limit=1
                $region60: #{upsample_forward.1} parent=58 // loop_pre_header
                  _
                $region61: #{upsample_forward.1} parent=58 // loop_header
                  %s898 = sphi 0, %s902
                  %p899 = scmp.ge.s32.totalorder %s898, 1
                  %s903 = sphi %s741, %s741
                  %s904 = sphi %s750, %s750
                $region62: #{upsample_forward.1} parent=58 // loop_header_branch
                  %901 = sbr.rel (%p899) target = $region66
                $region63: #{upsample_forward.1} parent=58 // loop_body
                  %v905 = vld [vmem:[%s903] sm:$0xff]
                  %906 = vst [vmem:[%s904] sm:$0xff] %v905
                  %v907 = vld [vmem:[%s903 + $0x8] sm:$0xff]
                  %908 = vst [vmem:[%s904 + $0x8] sm:$0xff] %v907
                  %v909 = vld [vmem:[%s903 + $0x10] sm:$0xff]
                  %910 = vst [vmem:[%s904 + $0x20] sm:$0xff] %v909
                  %v911 = vld [vmem:[%s903 + $0x18] sm:$0xff]
                  %912 = vst [vmem:[%s904 + $0x28] sm:$0xff] %v911
                  %v913 = vld [vmem:[%s903 + $0x20] sm:$0xff]
                  %914 = vst [vmem:[%s904 + $0x40] sm:$0xff] %v913
                  %v915 = vld [vmem:[%s903 + $0x28] sm:$0xff]
                  %916 = vst [vmem:[%s904 + $0x48] sm:$0xff] %v915
                  %v917 = vld [vmem:[%s903 + $0x30] sm:$0xff]
                  %918 = vst [vmem:[%s904 + $0x60] sm:$0xff] %v917
                  %v919 = vld [vmem:[%s903 + $0x38] sm:$0xff]
                  %920 = vst [vmem:[%s904 + $0x68] sm:$0xff] %v919
                  %v921 = vld [vmem:[%s903 + $0x40] sm:$0xff]
                  %922 = vst [vmem:[%s904 + $0x80] sm:$0xff] %v921
                  %v923 = vld [vmem:[%s903 + $0x48] sm:$0xff]
                  %924 = vst [vmem:[%s904 + $0x88] sm:$0xff] %v923
                  %v925 = vld [vmem:[%s903 + $0x50] sm:$0xff]
                  %926 = vst [vmem:[%s904 + $0xa0] sm:$0xff] %v925
                  %v927 = vld [vmem:[%s903 + $0x58] sm:$0xff]
                  %928 = vst [vmem:[%s904 + $0xa8] sm:$0xff] %v927
                  %v929 = vld [vmem:[%s903 + $0x60] sm:$0xff]
                  %930 = vst [vmem:[%s904 + $0xc0] sm:$0xff] %v929
                  %v931 = vld [vmem:[%s903 + $0x68] sm:$0xff]
                  %932 = vst [vmem:[%s904 + $0xc8] sm:$0xff] %v931
                  %v933 = vld [vmem:[%s903 + $0x70] sm:$0xff]
                  %934 = vst [vmem:[%s904 + $0xe0] sm:$0xff] %v933
                  %v935 = vld [vmem:[%s903 + $0x78] sm:$0xff]
                  %936 = vst [vmem:[%s904 + $0xe8] sm:$0xff] %v935
                  %v937 = vld [vmem:[%s903 + $0x80] sm:$0xff]
                  %938 = vst [vmem:[%s904 + $0x100] sm:$0xff] %v937
                  %v939 = vld [vmem:[%s903 + $0x88] sm:$0xff]
                  %940 = vst [vmem:[%s904 + $0x108] sm:$0xff] %v939
                  %v941 = vld [vmem:[%s903 + $0x90] sm:$0xff]
                  %942 = vst [vmem:[%s904 + $0x120] sm:$0xff] %v941
                  %v943 = vld [vmem:[%s903 + $0x98] sm:$0xff]
                  %944 = vst [vmem:[%s904 + $0x128] sm:$0xff] %v943
                  %v945 = vld [vmem:[%s903 + $0xa0] sm:$0xff]
                  %946 = vst [vmem:[%s904 + $0x140] sm:$0xff] %v945
                  %v947 = vld [vmem:[%s903 + $0xa8] sm:$0xff]
                  %948 = vst [vmem:[%s904 + $0x148] sm:$0xff] %v947
                  %v949 = vld [vmem:[%s903 + $0xb0] sm:$0xff]
                  %950 = vst [vmem:[%s904 + $0x160] sm:$0xff] %v949
                  %v951 = vld [vmem:[%s903 + $0xb8] sm:$0xff]
                  %952 = vst [vmem:[%s904 + $0x168] sm:$0xff] %v951
                  %v953 = vld [vmem:[%s903 + $0xc0] sm:$0xff]
                  %954 = vst [vmem:[%s904 + $0x180] sm:$0xff] %v953
                  %v955 = vld [vmem:[%s903 + $0xc8] sm:$0xff]
                  %956 = vst [vmem:[%s904 + $0x188] sm:$0xff] %v955
                  %v957 = vld [vmem:[%s903 + $0xd0] sm:$0xff]
                  %958 = vst [vmem:[%s904 + $0x1a0] sm:$0xff] %v957
                  %v959 = vld [vmem:[%s903 + $0xd8] sm:$0xff]
                  %960 = vst [vmem:[%s904 + $0x1a8] sm:$0xff] %v959
                  %v961 = vld [vmem:[%s903 + $0xe0] sm:$0xff]
                  %962 = vst [vmem:[%s904 + $0x1c0] sm:$0xff] %v961
                  %v963 = vld [vmem:[%s903 + $0xe8] sm:$0xff]
                  %964 = vst [vmem:[%s904 + $0x1c8] sm:$0xff] %v963
                  %v965 = vld [vmem:[%s903 + $0xf0] sm:$0xff]
                  %966 = vst [vmem:[%s904 + $0x1e0] sm:$0xff] %v965
                  %v967 = vld [vmem:[%s903 + $0xf8] sm:$0xff]
                  %968 = vst [vmem:[%s904 + $0x1e8] sm:$0xff] %v967
                  %v969 = vld [vmem:[%s903 + $0x100] sm:$0xff]
                  %970 = vst [vmem:[%s904 + $0x200] sm:$0xff] %v969
                  %v971 = vld [vmem:[%s903 + $0x108] sm:$0xff]
                  %972 = vst [vmem:[%s904 + $0x208] sm:$0xff] %v971
                  %v973 = vld [vmem:[%s903 + $0x110] sm:$0xff]
                  %974 = vst [vmem:[%s904 + $0x220] sm:$0xff] %v973
                  %v975 = vld [vmem:[%s903 + $0x118] sm:$0xff]
                  %976 = vst [vmem:[%s904 + $0x228] sm:$0xff] %v975
                  %v977 = vld [vmem:[%s903 + $0x120] sm:$0xff]
                  %978 = vst [vmem:[%s904 + $0x240] sm:$0xff] %v977
                  %v979 = vld [vmem:[%s903 + $0x128] sm:$0xff]
                  %980 = vst [vmem:[%s904 + $0x248] sm:$0xff] %v979
                  %v981 = vld [vmem:[%s903 + $0x130] sm:$0xff]
                  %982 = vst [vmem:[%s904 + $0x260] sm:$0xff] %v981
                  %v983 = vld [vmem:[%s903 + $0x138] sm:$0xff]
                  %984 = vst [vmem:[%s904 + $0x268] sm:$0xff] %v983
                  %v985 = vld [vmem:[%s903 + $0x140] sm:$0xff]
                  %986 = vst [vmem:[%s904 + $0x280] sm:$0xff] %v985
                  %v987 = vld [vmem:[%s903 + $0x148] sm:$0xff]
                  %988 = vst [vmem:[%s904 + $0x288] sm:$0xff] %v987
                  %v989 = vld [vmem:[%s903 + $0x150] sm:$0xff]
                  %990 = vst [vmem:[%s904 + $0x2a0] sm:$0xff] %v989
                  %v991 = vld [vmem:[%s903 + $0x158] sm:$0xff]
                  %992 = vst [vmem:[%s904 + $0x2a8] sm:$0xff] %v991
                  %v993 = vld [vmem:[%s903 + $0x160] sm:$0xff]
                  %994 = vst [vmem:[%s904 + $0x2c0] sm:$0xff] %v993
                  %v995 = vld [vmem:[%s903 + $0x168] sm:$0xff]
                  %996 = vst [vmem:[%s904 + $0x2c8] sm:$0xff] %v995
                  %v997 = vld [vmem:[%s903 + $0x170] sm:$0xff]
                  %998 = vst [vmem:[%s904 + $0x2e0] sm:$0xff] %v997
                  %v999 = vld [vmem:[%s903 + $0x178] sm:$0xff]
                  %1000 = vst [vmem:[%s904 + $0x2e8] sm:$0xff] %v999
                  %v1001 = vld [vmem:[%s903 + $0x180] sm:$0xff]
                  %1002 = vst [vmem:[%s904 + $0x300] sm:$0xff] %v1001
                  %v1003 = vld [vmem:[%s903 + $0x188] sm:$0xff]
                  %1004 = vst [vmem:[%s904 + $0x308] sm:$0xff] %v1003
                  %v1005 = vld [vmem:[%s903 + $0x190] sm:$0xff]
                  %1006 = vst [vmem:[%s904 + $0x320] sm:$0xff] %v1005
                  %v1007 = vld [vmem:[%s903 + $0x198] sm:$0xff]
                  %1008 = vst [vmem:[%s904 + $0x328] sm:$0xff] %v1007
                  %v1009 = vld [vmem:[%s903 + $0x1a0] sm:$0xff]
                  %1010 = vst [vmem:[%s904 + $0x340] sm:$0xff] %v1009
                  %v1011 = vld [vmem:[%s903 + $0x1a8] sm:$0xff]
                  %1012 = vst [vmem:[%s904 + $0x348] sm:$0xff] %v1011
                  %v1013 = vld [vmem:[%s903 + $0x1b0] sm:$0xff]
                  %1014 = vst [vmem:[%s904 + $0x360] sm:$0xff] %v1013
                  %v1015 = vld [vmem:[%s903 + $0x1b8] sm:$0xff]
                  %1016 = vst [vmem:[%s904 + $0x368] sm:$0xff] %v1015
                  %v1017 = vld [vmem:[%s903 + $0x1c0] sm:$0xff]
                  %1018 = vst [vmem:[%s904 + $0x380] sm:$0xff] %v1017
                  %v1019 = vld [vmem:[%s903 + $0x1c8] sm:$0xff]
                  %1020 = vst [vmem:[%s904 + $0x388] sm:$0xff] %v1019
                  %v1021 = vld [vmem:[%s903 + $0x1d0] sm:$0xff]
                  %1022 = vst [vmem:[%s904 + $0x3a0] sm:$0xff] %v1021
                  %v1023 = vld [vmem:[%s903 + $0x1d8] sm:$0xff]
                  %1024 = vst [vmem:[%s904 + $0x3a8] sm:$0xff] %v1023
                  %v1025 = vld [vmem:[%s903 + $0x1e0] sm:$0xff]
                  %1026 = vst [vmem:[%s904 + $0x3c0] sm:$0xff] %v1025
                  %v1027 = vld [vmem:[%s903 + $0x1e8] sm:$0xff]
                  %1028 = vst [vmem:[%s904 + $0x3c8] sm:$0xff] %v1027
                  %v1029 = vld [vmem:[%s903 + $0x1f0] sm:$0xff]
                  %1030 = vst [vmem:[%s904 + $0x3e0] sm:$0xff] %v1029
                  %v1031 = vld [vmem:[%s903 + $0x1f8] sm:$0xff]
                  %1032 = vst [vmem:[%s904 + $0x3e8] sm:$0xff] %v1031
                $region64: #{upsample_forward.1} parent=58 // loop_footer
                  %s902 = sadd.s32 1, %s898
                $region65: #{upsample_forward.1} parent=58 // loop_footer_branch
                  %897 = sbr.rel target = $region61
                $region66: #{upsample_forward.1} parent=58 // loop_exit
                  _
              $region59: #{upsample_forward.1} parent=43 // pred_fallthru
                _
              // Predicated region
              $region67: #{upsample_forward.1} parent=43 // pred_check
                _
              $region68: #{upsample_forward.1} parent=43 // pred_check_branch
                %1034 = sbr.rel target = $region70
              $region69: #{upsample_forward.1} parent=43 // pred_region
                _
              $region70: #{upsample_forward.1} parent=43 // pred_fallthru
                _
            $region44: #{upsample_forward.1} parent=39 // pred_fallthru
              _
            // Predicated region
            $region45: #{upsample_forward.1} parent=39 // pred_check
              _
            $region46: #{upsample_forward.1} parent=39 // pred_check_branch
              %756 = sbr.rel target = $region48
            $region47: #{upsample_forward.1} parent=39 // pred_region
              %s758 = ssub.s32 256, 1
              loop: start=0, step=1, limit=1
              $region49: #{upsample_forward.1} parent=47 // loop_pre_header
                _
              $region50: #{upsample_forward.1} parent=47 // loop_header
                %s760 = sphi 0, %s764
                %p761 = scmp.ge.s32.totalorder %s760, 1
                %s765 = sphi %s741, %s741
                %s766 = sphi %s750, %s750
              $region51: #{upsample_forward.1} parent=47 // loop_header_branch
                %763 = sbr.rel (%p761) target = $region55
              $region52: #{upsample_forward.1} parent=47 // loop_body
                %v767 = vld [vmem:[%s765] sm:%s758]
                %768 = vst [vmem:[%s766] sm:%s758] %v767
                %v769 = vld [vmem:[%s765 + $0x8] sm:%s758]
                %770 = vst [vmem:[%s766 + $0x8] sm:%s758] %v769
                %v771 = vld [vmem:[%s765 + $0x10] sm:%s758]
                %772 = vst [vmem:[%s766 + $0x20] sm:%s758] %v771
                %v773 = vld [vmem:[%s765 + $0x18] sm:%s758]
                %774 = vst [vmem:[%s766 + $0x28] sm:%s758] %v773
                %v775 = vld [vmem:[%s765 + $0x20] sm:%s758]
                %776 = vst [vmem:[%s766 + $0x40] sm:%s758] %v775
                %v777 = vld [vmem:[%s765 + $0x28] sm:%s758]
                %778 = vst [vmem:[%s766 + $0x48] sm:%s758] %v777
                %v779 = vld [vmem:[%s765 + $0x30] sm:%s758]
                %780 = vst [vmem:[%s766 + $0x60] sm:%s758] %v779
                %v781 = vld [vmem:[%s765 + $0x38] sm:%s758]
                %782 = vst [vmem:[%s766 + $0x68] sm:%s758] %v781
                %v783 = vld [vmem:[%s765 + $0x40] sm:%s758]
                %784 = vst [vmem:[%s766 + $0x80] sm:%s758] %v783
                %v785 = vld [vmem:[%s765 + $0x48] sm:%s758]
                %786 = vst [vmem:[%s766 + $0x88] sm:%s758] %v785
                %v787 = vld [vmem:[%s765 + $0x50] sm:%s758]
                %788 = vst [vmem:[%s766 + $0xa0] sm:%s758] %v787
                %v789 = vld [vmem:[%s765 + $0x58] sm:%s758]
                %790 = vst [vmem:[%s766 + $0xa8] sm:%s758] %v789
                %v791 = vld [vmem:[%s765 + $0x60] sm:%s758]
                %792 = vst [vmem:[%s766 + $0xc0] sm:%s758] %v791
                %v793 = vld [vmem:[%s765 + $0x68] sm:%s758]
                %794 = vst [vmem:[%s766 + $0xc8] sm:%s758] %v793
                %v795 = vld [vmem:[%s765 + $0x70] sm:%s758]
                %796 = vst [vmem:[%s766 + $0xe0] sm:%s758] %v795
                %v797 = vld [vmem:[%s765 + $0x78] sm:%s758]
                %798 = vst [vmem:[%s766 + $0xe8] sm:%s758] %v797
                %v799 = vld [vmem:[%s765 + $0x80] sm:%s758]
                %800 = vst [vmem:[%s766 + $0x100] sm:%s758] %v799
                %v801 = vld [vmem:[%s765 + $0x88] sm:%s758]
                %802 = vst [vmem:[%s766 + $0x108] sm:%s758] %v801
                %v803 = vld [vmem:[%s765 + $0x90] sm:%s758]
                %804 = vst [vmem:[%s766 + $0x120] sm:%s758] %v803
                %v805 = vld [vmem:[%s765 + $0x98] sm:%s758]
                %806 = vst [vmem:[%s766 + $0x128] sm:%s758] %v805
                %v807 = vld [vmem:[%s765 + $0xa0] sm:%s758]
                %808 = vst [vmem:[%s766 + $0x140] sm:%s758] %v807
                %v809 = vld [vmem:[%s765 + $0xa8] sm:%s758]
                %810 = vst [vmem:[%s766 + $0x148] sm:%s758] %v809
                %v811 = vld [vmem:[%s765 + $0xb0] sm:%s758]
                %812 = vst [vmem:[%s766 + $0x160] sm:%s758] %v811
                %v813 = vld [vmem:[%s765 + $0xb8] sm:%s758]
                %814 = vst [vmem:[%s766 + $0x168] sm:%s758] %v813
                %v815 = vld [vmem:[%s765 + $0xc0] sm:%s758]
                %816 = vst [vmem:[%s766 + $0x180] sm:%s758] %v815
                %v817 = vld [vmem:[%s765 + $0xc8] sm:%s758]
                %818 = vst [vmem:[%s766 + $0x188] sm:%s758] %v817
                %v819 = vld [vmem:[%s765 + $0xd0] sm:%s758]
                %820 = vst [vmem:[%s766 + $0x1a0] sm:%s758] %v819
                %v821 = vld [vmem:[%s765 + $0xd8] sm:%s758]
                %822 = vst [vmem:[%s766 + $0x1a8] sm:%s758] %v821
                %v823 = vld [vmem:[%s765 + $0xe0] sm:%s758]
                %824 = vst [vmem:[%s766 + $0x1c0] sm:%s758] %v823
                %v825 = vld [vmem:[%s765 + $0xe8] sm:%s758]
                %826 = vst [vmem:[%s766 + $0x1c8] sm:%s758] %v825
                %v827 = vld [vmem:[%s765 + $0xf0] sm:%s758]
                %828 = vst [vmem:[%s766 + $0x1e0] sm:%s758] %v827
                %v829 = vld [vmem:[%s765 + $0xf8] sm:%s758]
                %830 = vst [vmem:[%s766 + $0x1e8] sm:%s758] %v829
                %v831 = vld [vmem:[%s765 + $0x100] sm:%s758]
                %832 = vst [vmem:[%s766 + $0x200] sm:%s758] %v831
                %v833 = vld [vmem:[%s765 + $0x108] sm:%s758]
                %834 = vst [vmem:[%s766 + $0x208] sm:%s758] %v833
                %v835 = vld [vmem:[%s765 + $0x110] sm:%s758]
                %836 = vst [vmem:[%s766 + $0x220] sm:%s758] %v835
                %v837 = vld [vmem:[%s765 + $0x118] sm:%s758]
                %838 = vst [vmem:[%s766 + $0x228] sm:%s758] %v837
                %v839 = vld [vmem:[%s765 + $0x120] sm:%s758]
                %840 = vst [vmem:[%s766 + $0x240] sm:%s758] %v839
                %v841 = vld [vmem:[%s765 + $0x128] sm:%s758]
                %842 = vst [vmem:[%s766 + $0x248] sm:%s758] %v841
                %v843 = vld [vmem:[%s765 + $0x130] sm:%s758]
                %844 = vst [vmem:[%s766 + $0x260] sm:%s758] %v843
                %v845 = vld [vmem:[%s765 + $0x138] sm:%s758]
                %846 = vst [vmem:[%s766 + $0x268] sm:%s758] %v845
                %v847 = vld [vmem:[%s765 + $0x140] sm:%s758]
                %848 = vst [vmem:[%s766 + $0x280] sm:%s758] %v847
                %v849 = vld [vmem:[%s765 + $0x148] sm:%s758]
                %850 = vst [vmem:[%s766 + $0x288] sm:%s758] %v849
                %v851 = vld [vmem:[%s765 + $0x150] sm:%s758]
                %852 = vst [vmem:[%s766 + $0x2a0] sm:%s758] %v851
                %v853 = vld [vmem:[%s765 + $0x158] sm:%s758]
                %854 = vst [vmem:[%s766 + $0x2a8] sm:%s758] %v853
                %v855 = vld [vmem:[%s765 + $0x160] sm:%s758]
                %856 = vst [vmem:[%s766 + $0x2c0] sm:%s758] %v855
                %v857 = vld [vmem:[%s765 + $0x168] sm:%s758]
                %858 = vst [vmem:[%s766 + $0x2c8] sm:%s758] %v857
                %v859 = vld [vmem:[%s765 + $0x170] sm:%s758]
                %860 = vst [vmem:[%s766 + $0x2e0] sm:%s758] %v859
                %v861 = vld [vmem:[%s765 + $0x178] sm:%s758]
                %862 = vst [vmem:[%s766 + $0x2e8] sm:%s758] %v861
                %v863 = vld [vmem:[%s765 + $0x180] sm:%s758]
                %864 = vst [vmem:[%s766 + $0x300] sm:%s758] %v863
                %v865 = vld [vmem:[%s765 + $0x188] sm:%s758]
                %866 = vst [vmem:[%s766 + $0x308] sm:%s758] %v865
                %v867 = vld [vmem:[%s765 + $0x190] sm:%s758]
                %868 = vst [vmem:[%s766 + $0x320] sm:%s758] %v867
                %v869 = vld [vmem:[%s765 + $0x198] sm:%s758]
                %870 = vst [vmem:[%s766 + $0x328] sm:%s758] %v869
                %v871 = vld [vmem:[%s765 + $0x1a0] sm:%s758]
                %872 = vst [vmem:[%s766 + $0x340] sm:%s758] %v871
                %v873 = vld [vmem:[%s765 + $0x1a8] sm:%s758]
                %874 = vst [vmem:[%s766 + $0x348] sm:%s758] %v873
                %v875 = vld [vmem:[%s765 + $0x1b0] sm:%s758]
                %876 = vst [vmem:[%s766 + $0x360] sm:%s758] %v875
                %v877 = vld [vmem:[%s765 + $0x1b8] sm:%s758]
                %878 = vst [vmem:[%s766 + $0x368] sm:%s758] %v877
                %v879 = vld [vmem:[%s765 + $0x1c0] sm:%s758]
                %880 = vst [vmem:[%s766 + $0x380] sm:%s758] %v879
                %v881 = vld [vmem:[%s765 + $0x1c8] sm:%s758]
                %882 = vst [vmem:[%s766 + $0x388] sm:%s758] %v881
                %v883 = vld [vmem:[%s765 + $0x1d0] sm:%s758]
                %884 = vst [vmem:[%s766 + $0x3a0] sm:%s758] %v883
                %v885 = vld [vmem:[%s765 + $0x1d8] sm:%s758]
                %886 = vst [vmem:[%s766 + $0x3a8] sm:%s758] %v885
                %v887 = vld [vmem:[%s765 + $0x1e0] sm:%s758]
                %888 = vst [vmem:[%s766 + $0x3c0] sm:%s758] %v887
                %v889 = vld [vmem:[%s765 + $0x1e8] sm:%s758]
                %890 = vst [vmem:[%s766 + $0x3c8] sm:%s758] %v889
                %v891 = vld [vmem:[%s765 + $0x1f0] sm:%s758]
                %892 = vst [vmem:[%s766 + $0x3e0] sm:%s758] %v891
                %v893 = vld [vmem:[%s765 + $0x1f8] sm:%s758]
                %894 = vst [vmem:[%s766 + $0x3e8] sm:%s758] %v893
              $region53: #{upsample_forward.1} parent=47 // loop_footer
                %s764 = sadd.s32 1, %s760
              $region54: #{upsample_forward.1} parent=47 // loop_footer_branch
                %759 = sbr.rel target = $region50
              $region55: #{upsample_forward.1} parent=47 // loop_exit
                _
            $region48: #{upsample_forward.1} parent=39 // pred_fallthru
              _
          $region40: #{upsample_forward.1} parent=35 // pred_fallthru
            _
          %1035 = vnop
        $region36: #{upsample_forward.1} parent=31 // pred_fallthru
          _
      $region32: #{upsample_forward.1} parent=5 // pred_fallthru
        _
      %p1036 = scmp.le.s32.totalorder 2, %s9
      // Predicated region
      $region71: #{upsample_forward.1} parent=5 // pred_check
        %p1037 = pneg %p1036
      $region72: #{upsample_forward.1} parent=5 // pred_check_branch
        %1039 = sbr.rel (%p1037) target = $region74
      $region73: #{upsample_forward.1} parent=5 // pred_region
        %s1040 = ssub.s32 %s9, 2
        // Predicated region
        $region75: #{upsample_forward.1} parent=73 // pred_check
          %p1041 = pneg %p125
        $region76: #{upsample_forward.1} parent=73 // pred_check_branch
          %1043 = sbr.rel (%p1041) target = $region78
        $region77: #{upsample_forward.1} parent=73 // pred_region
          %s1044 = sand.u32 %s110, 1
          %s1045 = sand.u32 %s110, 1
          %s1046 = smul.addr %s1045, 512
          %s1047 = scalar_lea.vmem [#allocation2], %s1046
        $region78: #{upsample_forward.1} parent=73 // pred_fallthru
          _
      $region74: #{upsample_forward.1} parent=5 // pred_fallthru
        _
    $region6: #{upsample_forward.1} parent=1 // loop_footer
      %s13 = sadd.s32 1, %s9
    $region7: #{upsample_forward.1} parent=1 // loop_footer_branch
      %8 = sbr.rel target = $region3
    $region8: #{upsample_forward.1} parent=1 // loop_exit
      _

</llo_original>
